<compile_context>
chip_gen: v7x
topology: tpu7x:2x2x1
jax: 0.10.0
libtpu: 0.0.40
codegen_flags: <defaults>
</compile_context>

<pallas_src>
import jax
import jax.numpy as jnp
from jax.experimental import pallas as pl
from jax.experimental.pallas import tpu as pltpu

LANES = 128
TR_MAX = 8192          # rows per grid step (4 MiB f32 per input per step)
SUBLANES = 8


def _bce_terms(p, t, binary_target):
    """Per-element BCE with PyTorch's -100 log clamp. p, t are f32."""
    if binary_target:
        # Hard 0/1 targets: one log + one clamp per element.
        p_sel = jnp.where(t > 0.5, p, 1.0 - p)
        return -jnp.maximum(jnp.log(p_sel), -100.0)
    log_p = jnp.maximum(jnp.log(p), -100.0)
    log_1mp = jnp.maximum(jnp.log(1.0 - p), -100.0)
    return -(t * log_p + (1.0 - t) * log_1mp)


def _partial_sums_jax(p, t, binary_target):
    """Plain-JAX (bce_sum, pt_sum, ppt_sum) for tiny tails / fallback."""
    p = p.astype(jnp.float32)
    t = t.astype(jnp.float32)
    bce = _bce_terms(p, t, binary_target)
    return jnp.sum(bce), jnp.sum(p * t), jnp.sum(p) + jnp.sum(t)


def _make_bce_dice_kernel(rows, tr, spc, need_mask, binary_target):
    """Reduction kernel over a (rows, 128) view.

    Accumulates full-vreg (8, 128) partial sums of [bce, p*t, p+t] directly
    into the per-core output block (1, 3, 8, 128).  `rows`, `tr`, `spc`,
    `need_mask`, `binary_target` are trace-time Python constants.
    """
    rows_mult8 = (tr % SUBLANES == 0)

    def kernel(pred_ref, tgt_ref, out_ref):
        c = pl.program_id(0)          # core slice ("parallel")
        i = pl.program_id(1)          # reduction step ("arbitrary")

        @pl.when(i == 0)
        def _init():
            out_ref[...] = jnp.zeros_like(out_ref)

        def accumulate(mask_rows):
            p = pred_ref[...].astype(jnp.float32)
            t = tgt_ref[...].astype(jnp.float32)

            if mask_rows:
                # Rows at/after `valid_rows` in this tile are out of range
                # (partial last tile or a fully-overhanging step of the
                # 2-core split).  p = t = 0 contributes exactly 0 to all
                # three sums (bce(0,0) = 0 thanks to the -100 clamp).
                g = c * spc + i                      # global step (scalar)
                valid_rows = rows - g * tr           # may be <= 0 (overhang)
                row_ids = jax.lax.broadcasted_iota(jnp.int32, p.shape, 0)
                valid = row_ids < valid_rows
                p = jnp.where(valid, p, 0.0)
                t = jnp.where(valid, t, 0.0)

            bce = _bce_terms(p, t, binary_target)
            pt = p * t
            ppt = p + t

            if rows_mult8:
                # Layout-preserving reshape; sum over the leading (vreg)
                # axis is pure VPU adds into a full (8, 128) vreg.
                def fold(x):
                    return jnp.sum(x.reshape(tr // SUBLANES, SUBLANES, LANES),
                                   axis=0)
                out_ref[0, 0] += fold(bce)
                out_ref[0, 1] += fold(pt)
                out_ref[0, 2] += fold(ppt)
            else:
                # Tiny full-array tile whose row count is not a multiple of
                # 8 (perf-irrelevant path): per-lane partials in sublane 0.
                out_ref[0, 0, 0:1, :] += jnp.sum(bce, axis=0, keepdims=True)
                out_ref[0, 1, 0:1, :] += jnp.sum(pt, axis=0, keepdims=True)
                out_ref[0, 2, 0:1, :] += jnp.sum(ppt, axis=0, keepdims=True)

        if need_mask:
            # Only boundary / overhang steps pay for the row mask.
            tile_is_full = (c * spc + i + 1) * tr <= rows

            @pl.when(tile_is_full)
            def _full():
                accumulate(mask_rows=False)

            @pl.when(jnp.logical_not(tile_is_full))
            def _partial():
                accumulate(mask_rows=True)
        else:
            accumulate(mask_rows=False)

    return kernel


def bce_dice_loss(pred, target, weight=(1.0, 1.0), binary_target=False,
                  max_rows_per_step=TR_MAX):
    """BCE + Dice loss.  pred/target: any shape (e.g. NCHW), pred in (0, 1).

    Inputs may be narrow dtypes (e.g. bf16 pred, int8/float target); they are
    cast to f32 in-register inside the kernel.  Set binary_target=True only
    when targets are guaranteed to be hard 0/1 masks.
    """
    if weight is None:
        weight = (1.0, 1.0)
    pred_flat = jnp.reshape(pred, (-1,))
    tgt_flat = jnp.reshape(target, (-1,))
    n = pred_flat.shape[0]

    rem = n % LANES
    n_aligned = n - rem
    rows = n_aligned // LANES

    bce_sum = jnp.float32(0.0)
    pt_sum = jnp.float32(0.0)
    ppt_sum = jnp.float32(0.0)

    if rows > 0:
        pred2d = pred_flat[:n_aligned].reshape(rows, LANES)
        tgt2d = tgt_flat[:n_aligned].reshape(rows, LANES)

        # Tile rows: full array if it fits in one step (full-array blocks are
        # exempt from the (8, 128) divisibility rule), else a large multiple
        # of 8 rows.
        if rows <= max_rows_per_step:
            tr = rows
        else:
            tr = max(SUBLANES, (max_rows_per_step // SUBLANES) * SUBLANES)

        steps = pl.cdiv(rows, tr)
        num_cores = 2 if steps >= 2 else 1          # v7x: 2 TCs; v5e/v6e: no-op
        spc = pl.cdiv(steps, num_cores)             # steps per core
        need_mask = (num_cores * spc * tr) != rows
        overhang = (num_cores * spc) > steps

        def in_map(c, i):
            g = c * spc + i
            if overhang:
                g = jnp.minimum(g, steps - 1)       # clamp fully-OOB steps
            return (g, 0)

        kernel = _make_bce_dice_kernel(rows, tr, spc, need_mask, binary_target)

        partials = pl.pallas_call(
            kernel,
            out_shape=jax.ShapeDtypeStruct((num_cores, 3, SUBLANES, LANES),
                                           jnp.float32),
            grid_spec=pltpu.PrefetchScalarGridSpec(
                num_scalar_prefetch=0,
                grid=(num_cores, spc),
                in_specs=[
                    pl.BlockSpec((tr, LANES), in_map),
                    pl.BlockSpec((tr, LANES), in_map),
                ],
                out_specs=pl.BlockSpec((1, 3, SUBLANES, LANES),
                                       lambda c, i: (c, 0, 0, 0)),
            ),
            compiler_params=pltpu.CompilerParams(
                dimension_semantics=("parallel", "arbitrary"),
                vmem_limit_bytes=32 * 1024 * 1024),
        )(pred2d, tgt2d)

        sums = jnp.sum(partials, axis=(0, 2, 3))    # (3,)
        bce_sum = sums[0]
        pt_sum = sums[1]
        ppt_sum = sums[2]

    if rem:
        # <=127-element tail handled in plain JAX (no padded copy of inputs).
        tb, tp, tpp = _partial_sums_jax(pred_flat[n_aligned:],
                                        tgt_flat[n_aligned:], binary_target)
        bce_sum = bce_sum + tb
        pt_sum = pt_sum + tp
        ppt_sum = ppt_sum + tpp

    bce_loss = bce_sum / jnp.float32(n)
    dice_coef = (2.0 * pt_sum + 1.0) / (ppt_sum + 1.0)
    w0, w1 = weight
    return w0 * bce_loss + w1 * (1.0 - dice_coef)


def _reference(pred, target, weight=(1.0, 1.0)):
    p = jnp.reshape(pred, (-1,)).astype(jnp.float32)
    t = jnp.reshape(target, (-1,)).astype(jnp.float32)
    bce = jnp.mean(-(t * jnp.maximum(jnp.log(p), -100.0)
                     + (1.0 - t) * jnp.maximum(jnp.log(1.0 - p), -100.0)))
    dice = (2.0 * jnp.sum(p * t) + 1.0) / (jnp.sum(p) + jnp.sum(t) + 1.0)
    return weight[0] * bce + weight[1] * (1.0 - dice)


if __name__ == "__main__":
    key = jax.random.PRNGKey(0)
    k1, k2 = jax.random.split(key)

    # Main example: NCHW probabilities + binary mask (128-aligned count).
    x_shape = (2, 4, 16, 16)
    pred = jax.nn.sigmoid(jax.random.normal(k1, x_shape, jnp.float32))
    target = (jax.random.uniform(k2, x_shape) > 0.5).astype(jnp.float32)

    loss = jax.block_until_ready(bce_dice_loss(pred, target, weight=(1.0, 1.0)))
    ref = _reference(pred, target, weight=(1.0, 1.0))
    assert jnp.allclose(loss, ref, rtol=1e-5, atol=1e-5), (loss, ref)

    # Binary-target fast path (single log) — valid for hard 0/1 masks.
    loss_b = jax.block_until_ready(bce_dice_loss(pred, target, binary_target=True))
    assert jnp.allclose(loss_b, ref, rtol=1e-5, atol=1e-5), (loss_b, ref)

    # Narrow-dtype pred (bf16) streamed as-is, cast in-register in the kernel.
    pred_bf16 = pred.astype(jnp.bfloat16)
    loss_bf = jax.block_until_ready(bce_dice_loss(pred_bf16, target))
    ref_bf = _reference(pred_bf16, target)
    assert jnp.allclose(loss_bf, ref_bf, rtol=1e-5, atol=1e-5), (loss_bf, ref_bf)

    # Element count not a multiple of 128 -> pure-JAX tail path (no pad copy).
    y_shape = (1, 3, 11, 13)
    pred2 = jax.nn.sigmoid(jax.random.normal(k1, y_shape, jnp.float32))
    target2 = (jax.random.uniform(k2, y_shape) > 0.5).astype(jnp.float32)
    loss2 = jax.block_until_ready(bce_dice_loss(pred2, target2))
    ref2 = _reference(pred2, target2)
    assert jnp.allclose(loss2, ref2, rtol=1e-5, atol=1e-5), (loss2, ref2)

    # Multi-step grid + 2-core split + masked boundary/overhang steps
    # (small tile override keeps the test tiny while exercising the path).
    z_shape = (2, 4, 16, 33)   # 4224 elements -> 33 rows of 128
    pred3 = jax.nn.sigmoid(jax.random.normal(k1, z_shape, jnp.float32))
    target3 = (jax.random.uniform(k2, z_shape) > 0.5).astype(jnp.float32)
    loss3 = jax.block_until_ready(
        bce_dice_loss(pred3, target3, max_rows_per_step=8))
    ref3 = _reference(pred3, target3)
    assert jnp.allclose(loss3, ref3, rtol=1e-5, atol=1e-5), (loss3, ref3)

    print("KERNEL_OK")
</pallas_src>

<mosaic_0001>
module attributes {stable_mosaic.version = 11 : i64} {
  func.func @kernel(%arg0: i32, %arg1: i32, %arg2: memref<16x128xf32, #tpu.memory_space<vmem>>, %arg3: memref<16x128xf32, #tpu.memory_space<vmem>>, %arg4: memref<1x3x8x128xf32, #tpu.memory_space<vmem>>) attributes {dimension_semantics = [#tpu.dimension_semantics<parallel>, #tpu.dimension_semantics<arbitrary>], iteration_bounds = array<i64: 1, 1>, scalar_prefetch = 0 : i64, scratch_operands = 0 : i64, tpu.core_type = #tpu.core_type<tc>, window_params = [{transform_indices = @transform_0, window_bounds = array<i64: 16, 128>}, {transform_indices = @transform_1, window_bounds = array<i64: 16, 128>}, {transform_indices = @transform_2, window_bounds = array<i64: 1, 3, 8, 128>}]} {
    %c0_i32 = arith.constant 0 : i32
    %0 = arith.cmpi eq, %arg1, %c0_i32 : i32
    %1 = arith.extui %0 : i1 to i32
    %c0_i32_0 = arith.constant 0 : i32
    %2 = arith.cmpi ne, %1, %c0_i32_0 : i32
    scf.if %2 {
      %cst_33 = arith.constant 0.000000e+00 : f32
      %46 = vector.broadcast %cst_33 : f32 to vector<1x3x8x128xf32>
      %c0_34 = arith.constant 0 : index
      %c0_35 = arith.constant 0 : index
      %c0_36 = arith.constant 0 : index
      %c0_37 = arith.constant 0 : index
      %47 = vector.load %arg4[%c0_34, %c0_35, %c0_36, %c0_37] : memref<1x3x8x128xf32, #tpu.memory_space<vmem>>, vector<1x3x8x128xf32>
      tpu.vector_store %arg4[%c0_34, %c0_35, %c0_36, %c0_37], %46 {strides = array<i32>} : memref<1x3x8x128xf32, #tpu.memory_space<vmem>>, vector<1x3x8x128xf32>,
    } else {
    }
    %c0 = arith.constant 0 : index
    %c0_1 = arith.constant 0 : index
    %3 = vector.load %arg2[%c0, %c0_1] : memref<16x128xf32, #tpu.memory_space<vmem>>, vector<16x128xf32>
    %c0_2 = arith.constant 0 : index
    %c0_3 = arith.constant 0 : index
    %4 = vector.load %arg3[%c0_2, %c0_3] : memref<16x128xf32, #tpu.memory_space<vmem>>, vector<16x128xf32>
    %5 = math.log %3 : vector<16x128xf32>
    %cst = arith.constant -1.000000e+02 : f32
    %6 = vector.broadcast %cst : f32 to vector<16x128xf32>
    %7 = arith.maximumf %5, %6 : vector<16x128xf32>
    %cst_4 = arith.constant 1.000000e+00 : f32
    %8 = vector.broadcast %cst_4 : f32 to vector<16x128xf32>
    %9 = arith.subf %8, %3 : vector<16x128xf32>
    %10 = math.log %9 : vector<16x128xf32>
    %cst_5 = arith.constant -1.000000e+02 : f32
    %11 = vector.broadcast %cst_5 : f32 to vector<16x128xf32>
    %12 = arith.maximumf %10, %11 : vector<16x128xf32>
    %13 = arith.mulf %4, %7 : vector<16x128xf32>
    %cst_6 = arith.constant 1.000000e+00 : f32
    %14 = vector.broadcast %cst_6 : f32 to vector<16x128xf32>
    %15 = arith.subf %14, %4 : vector<16x128xf32>
    %16 = arith.mulf %15, %12 : vector<16x128xf32>
    %17 = arith.addf %13, %16 : vector<16x128xf32>
    %cst_7 = arith.constant 0.000000e+00 : f32
    %18 = vector.broadcast %cst_7 : f32 to vector<16x128xf32>
    %19 = arith.subf %18, %17 : vector<16x128xf32>
    %20 = arith.mulf %3, %4 : vector<16x128xf32>
    %21 = arith.addf %3, %4 : vector<16x128xf32>
    %c0_8 = arith.constant 0 : index
    %c0_9 = arith.constant 0 : index
    %c0_10 = arith.constant 0 : index
    %c0_11 = arith.constant 0 : index
    %22 = vector.load %arg4[%c0_8, %c0_9, %c0_10, %c0_11] : memref<1x3x8x128xf32, #tpu.memory_space<vmem>>, vector<1x1x8x128xf32>
    %23 = vector.shape_cast %22 : vector<1x1x8x128xf32> to vector<8x128xf32>
    %24 = vector.shape_cast %19 : vector<16x128xf32> to vector<2x8x128xf32>
    %cst_12 = arith.constant dense<0.000000e+00> : vector<8x128xf32>
    %25 = vector.multi_reduction <add>, %24, %cst_12 [0] : vector<2x8x128xf32> to vector<8x128xf32>
    %26 = arith.addf %23, %25 : vector<8x128xf32>
    %c0_13 = arith.constant 0 : index
    %c0_14 = arith.constant 0 : index
    %c0_15 = arith.constant 0 : index
    %c0_16 = arith.constant 0 : index
    %27 = vector.load %arg4[%c0_13, %c0_14, %c0_15, %c0_16] : memref<1x3x8x128xf32, #tpu.memory_space<vmem>>, vector<1x1x8x128xf32>
    %28 = vector.shape_cast %27 : vector<1x1x8x128xf32> to vector<8x128xf32>
    %29 = vector.shape_cast %26 : vector<8x128xf32> to vector<1x1x8x128xf32>
    tpu.vector_store %arg4[%c0_13, %c0_14, %c0_15, %c0_16], %29 {strides = array<i32>} : memref<1x3x8x128xf32, #tpu.memory_space<vmem>>, vector<1x1x8x128xf32>,
    %c0_17 = arith.constant 0 : index
    %c1 = arith.constant 1 : index
    %c0_18 = arith.constant 0 : index
    %c0_19 = arith.constant 0 : index
    %30 = vector.load %arg4[%c0_17, %c1, %c0_18, %c0_19] : memref<1x3x8x128xf32, #tpu.memory_space<vmem>>, vector<1x1x8x128xf32>
    %31 = vector.shape_cast %30 : vector<1x1x8x128xf32> to vector<8x128xf32>
    %32 = vector.shape_cast %20 : vector<16x128xf32> to vector<2x8x128xf32>
    %cst_20 = arith.constant dense<0.000000e+00> : vector<8x128xf32>
    %33 = vector.multi_reduction <add>, %32, %cst_20 [0] : vector<2x8x128xf32> to vector<8x128xf32>
    %34 = arith.addf %31, %33 : vector<8x128xf32>
    %c0_21 = arith.constant 0 : index
    %c1_22 = arith.constant 1 : index
    %c0_23 = arith.constant 0 : index
    %c0_24 = arith.constant 0 : index
    %35 = vector.load %arg4[%c0_21, %c1_22, %c0_23, %c0_24] : memref<1x3x8x128xf32, #tpu.memory_space<vmem>>, vector<1x1x8x128xf32>
    %36 = vector.shape_cast %35 : vector<1x1x8x128xf32> to vector<8x128xf32>
    %37 = vector.shape_cast %34 : vector<8x128xf32> to vector<1x1x8x128xf32>
    tpu.vector_store %arg4[%c0_21, %c1_22, %c0_23, %c0_24], %37 {strides = array<i32>} : memref<1x3x8x128xf32, #tpu.memory_space<vmem>>, vector<1x1x8x128xf32>,
    %c0_25 = arith.constant 0 : index
    %c2 = arith.constant 2 : index
    %c0_26 = arith.constant 0 : index
    %c0_27 = arith.constant 0 : index
    %38 = vector.load %arg4[%c0_25, %c2, %c0_26, %c0_27] : memref<1x3x8x128xf32, #tpu.memory_space<vmem>>, vector<1x1x8x128xf32>
    %39 = vector.shape_cast %38 : vector<1x1x8x128xf32> to vector<8x128xf32>
    %40 = vector.shape_cast %21 : vector<16x128xf32> to vector<2x8x128xf32>
    %cst_28 = arith.constant dense<0.000000e+00> : vector<8x128xf32>
    %41 = vector.multi_reduction <add>, %40, %cst_28 [0] : vector<2x8x128xf32> to vector<8x128xf32>
    %42 = arith.addf %39, %41 : vector<8x128xf32>
    %c0_29 = arith.constant 0 : index
    %c2_30 = arith.constant 2 : index
    %c0_31 = arith.constant 0 : index
    %c0_32 = arith.constant 0 : index
    %43 = vector.load %arg4[%c0_29, %c2_30, %c0_31, %c0_32] : memref<1x3x8x128xf32, #tpu.memory_space<vmem>>, vector<1x1x8x128xf32>
    %44 = vector.shape_cast %43 : vector<1x1x8x128xf32> to vector<8x128xf32>
    %45 = vector.shape_cast %42 : vector<8x128xf32> to vector<1x1x8x128xf32>
    tpu.vector_store %arg4[%c0_29, %c2_30, %c0_31, %c0_32], %45 {strides = array<i32>} : memref<1x3x8x128xf32, #tpu.memory_space<vmem>>, vector<1x1x8x128xf32>,
    return
  }
  func.func @transform_0(%arg0: i32, %arg1: i32) -> (i32, i32) {
    %c1_i32 = arith.constant 1 : i32
    %0 = arith.muli %arg0, %c1_i32 : i32
    %1 = arith.addi %0, %arg1 : i32
    %c0_i32 = arith.constant 0 : i32
    %c0_i32_0 = arith.constant 0 : i32
    return %1, %c0_i32 : i32, i32
  }
  func.func @transform_1(%arg0: i32, %arg1: i32) -> (i32, i32) {
    %c1_i32 = arith.constant 1 : i32
    %0 = arith.muli %arg0, %c1_i32 : i32
    %1 = arith.addi %0, %arg1 : i32
    %c0_i32 = arith.constant 0 : i32
    %c0_i32_0 = arith.constant 0 : i32
    return %1, %c0_i32 : i32, i32
  }
  func.func @transform_2(%arg0: i32, %arg1: i32) -> (i32, i32, i32, i32) {
    %c0_i32 = arith.constant 0 : i32
    %c0_i32_0 = arith.constant 0 : i32
    %c0_i32_1 = arith.constant 0 : i32
    %c0_i32_2 = arith.constant 0 : i32
    return %arg0, %c0_i32, %c0_i32_0, %c0_i32_1 : i32, i32, i32, i32
  }
}

</mosaic_0001>

<llo_original>
// kernel: tpu_custom_call.1
$region0: #{tpu_custom_call.1}
  #allocation0 [shape = 'u32[]', space=smem, size = 0x4, offset = 0x4, fixed_abs, tag = 'smem constant byte address 0x4 - core index']
  #allocation1 [shape = 'u32[144,128]{1,0:T(1,128)}', space=vmem, size = 0x12000, scoped, tag = 'internal scratch']
  %s0 = inlined_call_operand.hbm [shape: f32[16,128], index: 0, kind: input, shape index: {}]
  %s1 = inlined_call_operand.hbm [shape: f32[16,128], index: 1, kind: input, shape index: {}]
  %s2 = inlined_call_operand.hbm [shape: f32[1,3,8,128], index: 2, kind: output, shape index: {}]
  %s3 = sld [smem:[#allocation0]]
  $region30: #{tpu_custom_call.1} parent=0
    _
  %s5 = ssub.s32 1, %s3
  %s6 = scalar_select 0, %s5, %s3
  $region1: #{tpu_custom_call.1} parent=0
    #allocation2 [shape = 'u8[8192]{0}', space=vmem, size = 0x2000, scoped, tag = 'input window, operand 0, single buffered']
    #allocation3 [shape = 's32[1]{0}', space=sflag, size = 0x4, scoped, tag = 'scoped memory for tpu_custom_call.1']
    #allocation4 [shape = 's32[1]{0}', space=sflag, size = 0x4, scoped, tag = 'scoped memory for tpu_custom_call.1']
    #allocation5 [shape = 'u8[8192]{0}', space=vmem, size = 0x2000, scoped, tag = 'input window, operand 1, single buffered']
    #allocation6 [shape = 's32[1]{0}', space=sflag, size = 0x4, scoped, tag = 'scoped memory for tpu_custom_call.1']
    #allocation7 [shape = 'u8[12288]{0}', space=vmem, size = 0x3000, scoped, tag = 'output window, operand 0, single buffered']
    %7 = vsyncpa [#allocation3], 0
    %8 = vsyncpa [#allocation6], 0
    %9 = vsyncpa [#allocation4], 0
    // Predicated region
    $region2: #{tpu_custom_call.1} parent=1 // pred_check
      _
    $region3: #{tpu_custom_call.1} parent=1 // pred_check_branch
      %11 = sbr.rel (0) target = $region5
    $region4: #{tpu_custom_call.1} parent=1 // pred_region
      %s12 = sadd.s32 0, 0
      %s13 = smul.u32 2, %s12
      %s15 = ssub.s32 256, 256
      %16 = vsyncadd [#allocation3], %s15
      %s17 = smul.addr %s13, 128
      %s18 = scalar_lea.hbm %s0, %s17
      %s19 = sshll.u32 [#allocation2], 4
      %s20 = int_to_ptr.vmem [resolvable:$true] %s19
      %25 = dma.hbm_to_vmem [thread:$0]  %s18, 256, %s20, [#allocation3], 128, 128, 8
    $region5: #{tpu_custom_call.1} parent=1 // pred_fallthru
      _
    // Predicated region
    $region6: #{tpu_custom_call.1} parent=1 // pred_check
      _
    $region7: #{tpu_custom_call.1} parent=1 // pred_check_branch
      %27 = sbr.rel (0) target = $region9
    $region8: #{tpu_custom_call.1} parent=1 // pred_region
      %s28 = sadd.s32 0, 0
      %s29 = smul.u32 2, %s28
      %s31 = ssub.s32 256, 256
      %32 = vsyncadd [#allocation6], %s31
      %s33 = smul.addr %s29, 128
      %s34 = scalar_lea.hbm %s1, %s33
      %s35 = sshll.u32 [#allocation5], 4
      %s36 = int_to_ptr.vmem [resolvable:$true] %s35
      %41 = dma.hbm_to_vmem [thread:$0]  %s34, 256, %s36, [#allocation6], 128, 128, 8
    $region9: #{tpu_custom_call.1} parent=1 // pred_fallthru
      _
    // Predicated region
    $region10: #{tpu_custom_call.1} parent=1 // pred_check
      _
    $region11: #{tpu_custom_call.1} parent=1 // pred_check_branch
      %43 = sbr.rel (0) target = $region13
    $region12: #{tpu_custom_call.1} parent=1 // pred_region
      %44 = dma.done [#allocation3], 256
    $region13: #{tpu_custom_call.1} parent=1 // pred_fallthru
      _
    // Predicated region
    $region14: #{tpu_custom_call.1} parent=1 // pred_check
      _
    $region15: #{tpu_custom_call.1} parent=1 // pred_check_branch
      %46 = sbr.rel (0) target = $region17
    $region16: #{tpu_custom_call.1} parent=1 // pred_region
      %47 = dma.done [#allocation6], 256
    $region17: #{tpu_custom_call.1} parent=1 // pred_fallthru
      _
    %s48 = sadd.s32 0, 0
    %s49 = smul.u32 2, %s48
    %s50 = sadd.s32 0, 0
    %s51 = smul.u32 2, %s50
    %p52 = scmp.eq.s32.totalorder 0, 0
    // Predicated region
    $region18: #{tpu_custom_call.1} parent=1 // pred_check
      %p53 = pneg %p52
    $region19: #{tpu_custom_call.1} parent=1 // pred_check_branch
      %55 = sbr.rel (%p53) target = $region21
    $region20: #{tpu_custom_call.1} parent=1 // pred_region
      %56 = vst [vmem:[#allocation7] sm:$0xff] 0.0
      %57 = vst [vmem:[#allocation7 + $0x8] sm:$0xff] 0.0
      %58 = vst [vmem:[#allocation7 + $0x10] sm:$0xff] 0.0
    $region21: #{tpu_custom_call.1} parent=1 // pred_fallthru
      _
    %v59 = vld [vmem:[#allocation2] sm:$0xff]
    %v60 = vld [vmem:[#allocation2 + $0x8] sm:$0xff]
    %v61 = vld [vmem:[#allocation5] sm:$0xff]
    %v62 = vld [vmem:[#allocation5 + $0x8] sm:$0xff]
    %v63 = vlog2.pop %v59
    %v64 = vmul.f32 %v63, 0.6931472
    %v65 = vlog2.pop %v60
    %v66 = vmul.f32 %v65, 0.6931472
    %v67 = vmax.f32 %v64, -100.0
    %v68 = vmax.f32 %v66, -100.0
    %v69 = vsub.f32 1.0, %v59
    %v70 = vsub.f32 1.0, %v60
    %v71 = vlog2.pop %v69
    %v72 = vmul.f32 %v71, 0.6931472
    %v73 = vlog2.pop %v70
    %v74 = vmul.f32 %v73, 0.6931472
    %v75 = vmax.f32 %v72, -100.0
    %v76 = vmax.f32 %v74, -100.0
    %v77 = vmul.f32 %v61, %v67
    %v78 = vmul.f32 %v62, %v68
    %v79 = vsub.f32 1.0, %v61
    %v80 = vsub.f32 1.0, %v62
    %v81 = vmul.f32 %v79, %v75
    %v82 = vmul.f32 %v80, %v76
    %v83 = vadd.f32 %v77, %v81
    %v84 = vadd.f32 %v78, %v82
    %v85 = vsub.f32 0.0, %v83
    %v86 = vsub.f32 0.0, %v84
    %v87 = vmul.f32 %v59, %v61
    %v88 = vmul.f32 %v60, %v62
    %v89 = vadd.f32 %v59, %v61
    %v90 = vadd.f32 %v60, %v62
    %v91 = vld [vmem:[#allocation7] sm:$0xff]
    %v92 = vadd.f32 %v85, %v86
    %v93 = vadd.f32 %v91, %v92
    %94 = vst [vmem:[#allocation7] sm:$0xff] %v93
    %s95 = scalar_lea.vmem [#allocation7], 8
    %v96 = vld [vmem:[%s95] sm:$0xff]
    %v97 = vadd.f32 %v87, %v88
    %v98 = vadd.f32 %v96, %v97
    %99 = vst [vmem:[%s95] sm:$0xff] %v98
    %s100 = scalar_lea.vmem [#allocation7], 16
    %v101 = vld [vmem:[%s100] sm:$0xff]
    %v102 = vadd.f32 %v89, %v90
    %v103 = vadd.f32 %v101, %v102
    %104 = vst [vmem:[%s100] sm:$0xff] %v103
    // Predicated region
    $region22: #{tpu_custom_call.1} parent=1 // pred_check
      _
    $region23: #{tpu_custom_call.1} parent=1 // pred_check_branch
      %106 = sbr.rel (0) target = $region25
    $region24: #{tpu_custom_call.1} parent=1 // pred_region
      %s108 = ssub.s32 384, 384
      %109 = vsyncadd [#allocation4], %s108
      %s110 = sshll.u32 [#allocation7], 4
      %s111 = int_to_ptr.vmem [resolvable:$true] %s110
      %116 = dma.vmem_to_hbm [thread:$0]  %s111, 384, %s2, [#allocation4], 128, 128, 8
    $region25: #{tpu_custom_call.1} parent=1 // pred_fallthru
      _
    // Predicated region
    $region26: #{tpu_custom_call.1} parent=1 // pred_check
      _
    $region27: #{tpu_custom_call.1} parent=1 // pred_check_branch
      %118 = sbr.rel (0) target = $region29
    $region28: #{tpu_custom_call.1} parent=1 // pred_region
      %119 = dma.done [#allocation4], 384
    $region29: #{tpu_custom_call.1} parent=1 // pred_fallthru
      _
    %120 = vsyncpa [#allocation3], 1
    %121 = vsyncpa [#allocation6], 1
    %122 = vsyncpa [#allocation4], 1

</llo_original>
